<compile_context>
chip_gen: v7x
topology: tpu7x:2x2x1
jax: 0.10.0
libtpu: 0.0.40
codegen_flags: <defaults>
</compile_context>

<pallas_src>
import functools

import jax
import jax.numpy as jnp
from jax.experimental import pallas as pl
from jax.experimental.pallas import tpu as pltpu

LANE = 128
MAX_TILE_L = 8192   # max lanes per reduction step (32 KiB fp32 per row run)
MAX_TILE_R = 8192   # cap rows per block (bounds lane-padded out/acc buffers)


def _round_up(x: int, m: int) -> int:
    return ((x + m - 1) // m) * m


def _cdiv(a: int, b: int) -> int:
    return -(-a // b)


def _sublane(dtype) -> int:
    # dtype-native sublane packing: 8 (fp32), 16 (bf16/fp16), 32 (int8/fp8).
    return max(8, 32 // jnp.dtype(dtype).itemsize)


def _target_block_bytes() -> int:
    """Per-step input block size.  Big blocks amortize the ~0.35us/step
    overhead; v7x (64 MiB VMEM, ~3.2 TB/s HBM) wants the biggest blocks."""
    try:
        cap = pltpu.get_tpu_info().vmem_capacity_bytes
    except Exception:           # interpret mode / older API: assume 128 MiB
        cap = 128 << 20
    return (16 << 20) if cap <= (96 << 20) else (12 << 20)


# ----------------------------------------------------------------------------
# Kernels
# ----------------------------------------------------------------------------
def _avgpool_kernel_single(x_ref, o_ref, *, inv_l: float, tile_l: int):
    """Single reduction step (H*W fits one block).  VPU adds over 128-lane
    column slices, one cross-lane reduce, scale, store."""
    n_full = tile_l // LANE
    tail = tile_l - n_full * LANE
    s = None
    if n_full:
        acc = x_ref[:, :LANE].astype(jnp.float32)
        for c in range(1, n_full):
            acc = acc + x_ref[:, c * LANE:(c + 1) * LANE].astype(jnp.float32)
        s = jnp.sum(acc, axis=1, keepdims=True)
    if tail:
        t = jnp.sum(x_ref[:, n_full * LANE:tile_l].astype(jnp.float32),
                    axis=1, keepdims=True)
        s = t if s is None else s + t
    o_ref[...] = (s * inv_l).astype(o_ref.dtype)


def _avgpool_kernel_multi(x_ref, o_ref, acc_ref, *, inv_l: float, L: int,
                          tile_l: int, ragged: bool):
    """Multi-step reduction with a persistent lane-wide fp32 accumulator.
    Only the last step masks out-of-range columns (hot path stays select-free)."""
    k = pl.program_id(1)
    nk = pl.num_programs(1)

    @pl.when(k == 0)
    def _init():
        acc_ref[...] = jnp.zeros_like(acc_ref)

    def accumulate(masked: bool):
        acc = acc_ref[...]
        if masked:
            col = jax.lax.broadcasted_iota(jnp.int32, acc.shape, 1)
            base = k * tile_l
        for c in range(tile_l // LANE):
            xs = x_ref[:, c * LANE:(c + 1) * LANE].astype(jnp.float32)
            if masked:
                xs = jnp.where(col < (L - base - c * LANE), xs, 0.0)
            acc = acc + xs
        acc_ref[...] = acc

    if ragged:
        @pl.when(k < nk - 1)
        def _full():
            accumulate(masked=False)

        @pl.when(k == nk - 1)
        def _last():
            accumulate(masked=True)
    else:
        accumulate(masked=False)

    @pl.when(k == nk - 1)
    def _finalize():
        row_sum = jnp.sum(acc_ref[...], axis=1, keepdims=True)   # one XLU reduce
        o_ref[...] = (row_sum * inv_l).astype(o_ref.dtype)


# ----------------------------------------------------------------------------
# Wrapper
# ----------------------------------------------------------------------------
def avg_pool(x: jax.Array) -> jax.Array:
    assert x.ndim == 4, "AvgPool expects NCHW input"
    N, C, H, W = x.shape
    R, L = N * C, H * W
    dtype = x.dtype
    itemsize = jnp.dtype(dtype).itemsize
    sub = _sublane(dtype)

    x2 = x.reshape(R, L)    # lane-dense slab (pure reshape, no copies)

    # --- reduction-axis tiling --------------------------------------------
    if L <= MAX_TILE_L:
        tile_l, n_k = L, 1          # one step; full-dim block is always legal
    else:
        n_k = _cdiv(L, MAX_TILE_L)
        tile_l = _round_up(_cdiv(L, n_k), LANE)   # balanced, 128-aligned
        n_k = _cdiv(L, tile_l)
    ragged = (L % tile_l) != 0      # ragged tail handled by in-kernel mask

    # --- row-axis tiling ----------------------------------------------------
    padded_l = max(LANE, _round_up(tile_l, LANE))     # lane-padded width
    target = _target_block_bytes()
    if R <= sub:
        tile_r = R
    else:
        tile_r = (target // (padded_l * itemsize)) // sub * sub
        tile_r = min(tile_r, MAX_TILE_R, _round_up(R, sub))
        tile_r = max(tile_r, sub)
        if tile_r >= R:             # keep >= 2 row blocks (both v7x TCs busy)
            tile_r = max(sub, _round_up(_cdiv(R, 2), sub))
    n_r = _cdiv(R, tile_r)

    # --- VMEM budget from padded footprints ---------------------------------
    padded_r = _round_up(tile_r, sub)
    in_bytes = padded_r * padded_l * itemsize          # input block (x2 bufs)
    out_bytes = padded_r * LANE * itemsize             # (tile_r,1) lane-padded
    work_bytes = padded_r * LANE * 4                   # fp32 acc / working slice
    vmem_limit = 2 * in_bytes + 2 * out_bytes + 2 * work_bytes + (4 << 20)
    vmem_limit = min(max(vmem_limit, 16 << 20), 56 << 20)

    inv_l = 1.0 / float(L)
    cost = pl.CostEstimate(flops=R * L, transcendentals=0,
                           bytes_accessed=R * L * itemsize + R * itemsize)
    params = pltpu.CompilerParams(
        dimension_semantics=("parallel",) if n_k == 1 else ("parallel", "arbitrary"),
        vmem_limit_bytes=vmem_limit)

    if n_k == 1:
        out2 = pl.pallas_call(
            functools.partial(_avgpool_kernel_single, inv_l=inv_l, tile_l=tile_l),
            out_shape=jax.ShapeDtypeStruct((R, 1), dtype),
            grid_spec=pltpu.PrefetchScalarGridSpec(
                num_scalar_prefetch=0,
                grid=(n_r,),
                in_specs=[pl.BlockSpec((tile_r, tile_l), lambda i: (i, 0))],
                out_specs=pl.BlockSpec((tile_r, 1), lambda i: (i, 0)),
            ),
            compiler_params=params,
            cost_estimate=cost,
        )(x2)
    else:
        assert tile_l % LANE == 0
        out2 = pl.pallas_call(
            functools.partial(_avgpool_kernel_multi, inv_l=inv_l, L=L,
                              tile_l=tile_l, ragged=ragged),
            out_shape=jax.ShapeDtypeStruct((R, 1), dtype),
            grid_spec=pltpu.PrefetchScalarGridSpec(
                num_scalar_prefetch=0,
                grid=(n_r, n_k),
                in_specs=[pl.BlockSpec((tile_r, tile_l), lambda i, k: (i, k))],
                out_specs=pl.BlockSpec((tile_r, 1), lambda i, k: (i, 0)),
                scratch_shapes=[pltpu.VMEM((tile_r, LANE), jnp.float32)],
            ),
            compiler_params=params,
            cost_estimate=cost,
        )(x2)

    return out2.reshape(N, C, 1, 1)


if __name__ == "__main__":
    key = jax.random.PRNGKey(0)

    # Primary small example consistent with the module (N=2, C=4, H=W=16).
    x = jax.random.normal(key, (2, 4, 16, 16), dtype=jnp.float32)
    out = avg_pool(x)
    jax.block_until_ready(out)
    ref = jnp.mean(x.reshape(2 * 4, -1), axis=1).reshape(2, 4, 1, 1)
    assert out.shape == ref.shape and out.dtype == ref.dtype
    assert jnp.allclose(out, ref, atol=1e-5, rtol=1e-5)

    # Non-128-divisible spatial (7x7) -> single-step tail path.
    x2 = jax.random.normal(jax.random.PRNGKey(1), (2, 3, 7, 7), dtype=jnp.float32)
    ref2 = jnp.mean(x2.reshape(2 * 3, -1), axis=1).reshape(2, 3, 1, 1)
    assert jnp.allclose(avg_pool(x2), ref2, atol=1e-5, rtol=1e-5)

    # H*W > 8192, not tile-divisible -> multi-step masked accumulator path.
    x3 = jax.random.normal(jax.random.PRNGKey(2), (1, 2, 100, 100), dtype=jnp.float32)
    ref3 = jnp.mean(x3.reshape(1 * 2, -1), axis=1).reshape(1, 2, 1, 1)
    assert jnp.allclose(avg_pool(x3), ref3, atol=1e-5, rtol=1e-5)

    print("KERNEL_OK")
</pallas_src>

<mosaic_0001>
module attributes {stable_mosaic.version = 11 : i64} {
  func.func @_avgpool_kernel_single(%arg0: i32, %arg1: memref<8x256xf32, #tpu.memory_space<vmem>>, %arg2: memref<8x1xf32, #tpu.memory_space<vmem>>) attributes {dimension_semantics = [#tpu.dimension_semantics<parallel>], iteration_bounds = array<i64: 1>, scalar_prefetch = 0 : i64, scratch_operands = 0 : i64, tpu.core_type = #tpu.core_type<tc>, window_params = [{transform_indices = @transform_0, window_bounds = array<i64: 8, 256>}, {transform_indices = @transform_1, window_bounds = array<i64: 8, 1>}]} {
    %c0 = arith.constant 0 : index
    %c0_0 = arith.constant 0 : index
    %0 = vector.load %arg1[%c0, %c0_0] : memref<8x256xf32, #tpu.memory_space<vmem>>, vector<8x128xf32>
    %c0_1 = arith.constant 0 : index
    %c128 = arith.constant 128 : index
    %1 = vector.load %arg1[%c0_1, %c128] : memref<8x256xf32, #tpu.memory_space<vmem>>, vector<8x128xf32>
    %2 = arith.addf %0, %1 : vector<8x128xf32>
    %cst = arith.constant dense<0.000000e+00> : vector<8xf32>
    %3 = vector.multi_reduction <add>, %2, %cst [1] : vector<8x128xf32> to vector<8xf32>
    %4 = vector.shape_cast %3 : vector<8xf32> to vector<8x1xf32>
    %cst_2 = arith.constant 3.906250e-03 : f32
    %5 = vector.broadcast %cst_2 : f32 to vector<8x1xf32>
    %6 = arith.mulf %4, %5 : vector<8x1xf32>
    %c0_3 = arith.constant 0 : index
    %c0_4 = arith.constant 0 : index
    %7 = vector.load %arg2[%c0_3, %c0_4] : memref<8x1xf32, #tpu.memory_space<vmem>>, vector<8x1xf32>
    tpu.vector_store %arg2[%c0_3, %c0_4], %6 {strides = array<i32>} : memref<8x1xf32, #tpu.memory_space<vmem>>, vector<8x1xf32>,
    return
  }
  func.func @transform_0(%arg0: i32) -> (i32, i32) {
    %c0_i32 = arith.constant 0 : i32
    %c0_i32_0 = arith.constant 0 : i32
    return %arg0, %c0_i32 : i32, i32
  }
  func.func @transform_1(%arg0: i32) -> (i32, i32) {
    %c0_i32 = arith.constant 0 : i32
    %c0_i32_0 = arith.constant 0 : i32
    return %arg0, %c0_i32 : i32, i32
  }
}

</mosaic_0001>

<llo_original>
// kernel: tpu_custom_call.1
$region0: #{tpu_custom_call.1}
  #allocation0 [shape = 'u32[]', space=smem, size = 0x4, offset = 0x4, fixed_abs, tag = 'smem constant byte address 0x4 - core index']
  #allocation1 [shape = 'u32[144,128]{1,0:T(1,128)}', space=vmem, size = 0x12000, scoped, tag = 'internal scratch']
  %s0 = inlined_call_operand.hbm [shape: f32[8,256], index: 0, kind: input, shape index: {}]
  %s1 = inlined_call_operand.vmem [shape: f32[8,1], index: 1, kind: output, shape index: {}]
  %s2 = sld [smem:[#allocation0]]
  $region18: #{tpu_custom_call.1} parent=0
    _
  %s4 = ssub.s32 1, %s2
  %s5 = scalar_select 0, %s4, %s2
  $region1: #{tpu_custom_call.1} parent=0
    #allocation2 [shape = 'u8[8192]{0}', space=vmem, size = 0x2000, scoped, tag = 'input window, operand 0, single buffered']
    #allocation3 [shape = 's32[1]{0}', space=sflag, size = 0x4, scoped, tag = 'scoped memory for tpu_custom_call.1']
    %6 = vsyncpa [#allocation3], 0
    // Predicated region
    $region2: #{tpu_custom_call.1} parent=1 // pred_check
      _
    $region3: #{tpu_custom_call.1} parent=1 // pred_check_branch
      %8 = sbr.rel (0) target = $region5
    $region4: #{tpu_custom_call.1} parent=1 // pred_region
      %s10 = ssub.s32 256, 256
      %11 = vsyncadd [#allocation3], %s10
      %s13 = sshll.u32 [#allocation2], 4
      %s14 = int_to_ptr.vmem [resolvable:$true] %s13
      %16 = dma.hbm_to_vmem [thread:$0]  %s0, 256, %s14, [#allocation3]
    $region5: #{tpu_custom_call.1} parent=1 // pred_fallthru
      _
    // Predicated region
    $region6: #{tpu_custom_call.1} parent=1 // pred_check
      _
    $region7: #{tpu_custom_call.1} parent=1 // pred_check_branch
      %18 = sbr.rel (0) target = $region9
    $region8: #{tpu_custom_call.1} parent=1 // pred_region
      %19 = dma.done [#allocation3], 256
    $region9: #{tpu_custom_call.1} parent=1 // pred_fallthru
      _
    %v20 = vld [vmem:[#allocation2] sm:$0xff]
    %v21 = vld [vmem:[#allocation2 + $0x8] sm:$0xff]
    %v22 = vadd.f32 %v20, %v21
    %23 = vadd.xlane.f32.xlu0 %v22
    %v24 = vpop.xlane.xlu0 %23
    %v25 = vmul.f32 %v24, 0.00390625
    %vm26 = vcmask 7168
    %27 = vst.msk [vmem:[%s1] sm:$0xff] %vm26, %v25
    // Predicated region
    $region10: #{tpu_custom_call.1} parent=1 // pred_check
      _
    $region11: #{tpu_custom_call.1} parent=1 // pred_check_branch
      %29 = sbr.rel (0) target = $region13
    $region12: #{tpu_custom_call.1} parent=1 // pred_region
      _
    $region13: #{tpu_custom_call.1} parent=1 // pred_fallthru
      _
    // Predicated region
    $region14: #{tpu_custom_call.1} parent=1 // pred_check
      _
    $region15: #{tpu_custom_call.1} parent=1 // pred_check_branch
      %31 = sbr.rel (0) target = $region17
    $region16: #{tpu_custom_call.1} parent=1 // pred_region
      _
    $region17: #{tpu_custom_call.1} parent=1 // pred_fallthru
      _
    %32 = vsyncpa [#allocation3], 1

</llo_original>
